<compile_context>
chip_gen: v7x
topology: tpu7x:2x2x1
jax: 0.10.0
libtpu: 0.0.40
codegen_flags: <defaults>
</compile_context>

<pallas_src>
import functools

import jax
import jax.numpy as jnp
from jax.experimental import pallas as pl
from jax.experimental.pallas import tpu as pltpu

IN_DIM = 27                 # input features
HID_DIM = 128               # hidden size
OUT_DIM = 27                # output classes
X_PAD = 32                  # x lane pad 27 -> 32 (K of the small first dot)
N_PAD = 128                 # output lane pad 27 -> 128 (lane-dense stores)
NEG_BIG = -1e30             # finite "minus infinity" folded into b2 pad columns


def _round_up(n, m):
    return ((n + m - 1) // m) * m


def _cdiv(a, b):
    return (a + b - 1) // b


def _pick_tm(B, cap=1024):
    """Batch tile: big (>=85% of HBM roofline needs >=512-row tiles), but split
    into >=2 tiles when B is large enough so the 'parallel' axis can use both
    v7x TensorCores; multiple of 16 so f32 and bf16 tiles are both legal."""
    n_tiles = max(1, _cdiv(B, cap))
    if n_tiles == 1 and B >= 512:
        n_tiles = 2
    return _round_up(_cdiv(B, n_tiles), 16)


def _prep_params(w1, b1, w2, b2, mxu_dtype):
    """Split/pad the weights once (resident in VMEM inside the kernels)."""
    w1x = jnp.zeros((X_PAD, HID_DIM), mxu_dtype).at[:IN_DIM].set(
        w1[:IN_DIM].astype(mxu_dtype))                       # (32, 128)
    w1h = w1[IN_DIM:].astype(mxu_dtype)                      # (128, 128)
    b1_2d = b1.reshape(1, HID_DIM).astype(jnp.float32)       # bias math stays f32
    w2p = jnp.zeros((HID_DIM, N_PAD), mxu_dtype).at[:, :OUT_DIM].set(
        w2.astype(mxu_dtype))                                # (128, 128)
    # Pad columns get a huge negative bias -> exp() == 0 -> they vanish from the
    # softmax without any in-kernel iota/where.
    b2p = jnp.full((1, N_PAD), NEG_BIG, jnp.float32).at[:, :OUT_DIM].set(
        b2.astype(jnp.float32))
    return w1x, w1h, b1_2d, w2p, b2p


# -----------------------------------------------------------------------------
# Single step (matches RNN.forward(input, hidden) exactly)
# -----------------------------------------------------------------------------
def _rnn_step_kernel(x_ref, h_ref, w1x_ref, w1h_ref, b1_ref, w2_ref, b2_ref,
                     a_ref, y_ref):
    # Layer 1: split-K matmul (x @ W1x + h @ W1h), f32 accumulation, f32 tanh.
    pre = (jnp.dot(x_ref[...], w1x_ref[...], preferred_element_type=jnp.float32)
           + jnp.dot(h_ref[...], w1h_ref[...], preferred_element_type=jnp.float32)
           + b1_ref[...])
    a = jnp.tanh(pre)
    a_ref[...] = a.astype(a_ref.dtype)

    # Layer 2: lane-dense N=128 matmul; pad columns carry a -1e30 bias.
    logits = (jnp.dot(a.astype(w2_ref.dtype), w2_ref[...],
                      preferred_element_type=jnp.float32) + b2_ref[...])

    # Numerically stable softmax with an EXACT divide (rows sum to 1).
    m = jnp.max(logits, axis=1, keepdims=True)
    e = jnp.exp(logits - m)
    denom = jnp.sum(e, axis=1, keepdims=True)
    y_ref[...] = (e / denom).astype(y_ref.dtype)


def rnn_forward(x, h, w1, b1, w2, b2, *, mxu_dtype=jnp.bfloat16, out_dtype=None,
                tm_cap=1024):
    """x: (B, 27), h: (B, 128).
    w1: (155, 128) == inp_to_hidden.weight.T ; b1: (128,)
    w2: (128, 27)  == hidden_to_output.weight.T ; b2: (27,)
    Returns (a, y): a (B, 128), y (B, 27), both in out_dtype (default mxu_dtype).
    Note: if driving this recurrently with bf16 outputs, keep an f32 copy of the
    carried hidden state outside (or use rnn_forward_seq, which does so in VMEM)."""
    B = x.shape[0]
    out_dtype = mxu_dtype if out_dtype is None else out_dtype
    TM = _pick_tm(B, tm_cap)
    B_pad = _round_up(B, TM)

    xp = jnp.zeros((B_pad, X_PAD), mxu_dtype).at[:B, :IN_DIM].set(
        x.astype(mxu_dtype))
    if B_pad == B:
        hp = h.astype(mxu_dtype)
    else:
        hp = jnp.zeros((B_pad, HID_DIM), mxu_dtype).at[:B].set(h.astype(mxu_dtype))
    w1x, w1h, b1_2d, w2p, b2p = _prep_params(w1, b1, w2, b2, mxu_dtype)

    grid = (B_pad // TM,)
    a_pad, y_pad = pl.pallas_call(
        _rnn_step_kernel,
        out_shape=(jax.ShapeDtypeStruct((B_pad, HID_DIM), out_dtype),
                   jax.ShapeDtypeStruct((B_pad, N_PAD), out_dtype)),
        grid_spec=pltpu.PrefetchScalarGridSpec(
            num_scalar_prefetch=0,
            grid=grid,
            in_specs=[
                pl.BlockSpec((TM, X_PAD), lambda i: (i, 0)),         # x (padded)
                pl.BlockSpec((TM, HID_DIM), lambda i: (i, 0)),       # h
                pl.BlockSpec((X_PAD, HID_DIM), lambda i: (0, 0)),    # W1x resident
                pl.BlockSpec((HID_DIM, HID_DIM), lambda i: (0, 0)),  # W1h resident
                pl.BlockSpec((1, HID_DIM), lambda i: (0, 0)),        # b1 resident
                pl.BlockSpec((HID_DIM, N_PAD), lambda i: (0, 0)),    # W2 resident
                pl.BlockSpec((1, N_PAD), lambda i: (0, 0)),          # b2 resident
            ],
            out_specs=[
                pl.BlockSpec((TM, HID_DIM), lambda i: (i, 0)),       # a
                pl.BlockSpec((TM, N_PAD), lambda i: (i, 0)),         # y (padded)
            ],
        ),
        compiler_params=pltpu.CompilerParams(
            dimension_semantics=("parallel",),       # split batch over TCs (v7x)
            vmem_limit_bytes=32 * 1024 * 1024,
        ),
    )(xp, hp, w1x, w1h, b1_2d, w2p, b2p)

    return a_pad[:B], y_pad[:B, :OUT_DIM]


# -----------------------------------------------------------------------------
# Fused time loop: T RNN steps in one pallas_call (hidden state lives in VMEM)
# -----------------------------------------------------------------------------
def _rnn_seq_kernel(x_ref, h0_ref, w1x_ref, w1h_ref, b1_ref, w2_ref, b2_ref,
                    a_ref, y_ref, h_scratch):
    t = pl.program_id(1)

    @pl.when(t == 0)
    def _():
        h_scratch[...] = h0_ref[...].astype(jnp.float32)

    mxu_dtype = w1h_ref.dtype
    pre = (jnp.dot(x_ref[...], w1x_ref[...], preferred_element_type=jnp.float32)
           + jnp.dot(h_scratch[...].astype(mxu_dtype), w1h_ref[...],
                     preferred_element_type=jnp.float32)
           + b1_ref[...])
    a = jnp.tanh(pre)
    h_scratch[...] = a                       # recurrent carry stays f32 in VMEM
    a_ref[...] = a.astype(a_ref.dtype)

    logits = (jnp.dot(a.astype(mxu_dtype), w2_ref[...],
                      preferred_element_type=jnp.float32) + b2_ref[...])
    m = jnp.max(logits, axis=1, keepdims=True)
    e = jnp.exp(logits - m)
    y_ref[...] = (e / jnp.sum(e, axis=1, keepdims=True)).astype(y_ref.dtype)


def rnn_forward_seq(xs, h0, w1, b1, w2, b2, *, mxu_dtype=jnp.bfloat16,
                    out_dtype=None, tm_cap=1024):
    """xs: (T, B, 27), h0: (B, 128). Runs all T steps inside one kernel; the
    weights stay resident in VMEM and the hidden state never touches HBM.
    Returns (a_seq, y_seq): (T, B, 128), (T, B, 27)."""
    T, B = xs.shape[0], xs.shape[1]
    out_dtype = mxu_dtype if out_dtype is None else out_dtype
    TM = _pick_tm(B, tm_cap)
    B_pad = _round_up(B, TM)

    xs_p = jnp.zeros((T, B_pad, X_PAD), mxu_dtype).at[:, :B, :IN_DIM].set(
        xs.astype(mxu_dtype))
    h0_p = jnp.zeros((B_pad, HID_DIM), jnp.float32).at[:B].set(
        h0.astype(jnp.float32))                # initial carry kept in f32
    w1x, w1h, b1_2d, w2p, b2p = _prep_params(w1, b1, w2, b2, mxu_dtype)

    grid = (B_pad // TM, T)                    # T innermost -> sequential carry
    a_seq, y_seq = pl.pallas_call(
        _rnn_seq_kernel,
        out_shape=(jax.ShapeDtypeStruct((T, B_pad, HID_DIM), out_dtype),
                   jax.ShapeDtypeStruct((T, B_pad, N_PAD), out_dtype)),
        grid_spec=pltpu.PrefetchScalarGridSpec(
            num_scalar_prefetch=0,
            grid=grid,
            in_specs=[
                pl.BlockSpec((None, TM, X_PAD), lambda b, t: (t, b, 0)),   # x_t
                pl.BlockSpec((TM, HID_DIM), lambda b, t: (b, 0)),          # h0
                pl.BlockSpec((X_PAD, HID_DIM), lambda b, t: (0, 0)),       # W1x
                pl.BlockSpec((HID_DIM, HID_DIM), lambda b, t: (0, 0)),     # W1h
                pl.BlockSpec((1, HID_DIM), lambda b, t: (0, 0)),           # b1
                pl.BlockSpec((HID_DIM, N_PAD), lambda b, t: (0, 0)),       # W2
                pl.BlockSpec((1, N_PAD), lambda b, t: (0, 0)),             # b2
            ],
            out_specs=[
                pl.BlockSpec((None, TM, HID_DIM), lambda b, t: (t, b, 0)), # a_t
                pl.BlockSpec((None, TM, N_PAD), lambda b, t: (t, b, 0)),   # y_t
            ],
            scratch_shapes=[pltpu.VMEM((TM, HID_DIM), jnp.float32)],       # h carry
        ),
        compiler_params=pltpu.CompilerParams(
            dimension_semantics=("parallel", "arbitrary"),
            vmem_limit_bytes=32 * 1024 * 1024,
        ),
    )(xs_p, h0_p, w1x, w1h, b1_2d, w2p, b2p)

    return a_seq[:, :B], y_seq[:, :B, :OUT_DIM]


# -----------------------------------------------------------------------------
# References & init
# -----------------------------------------------------------------------------
def rnn_step_ref(x, h, w1, b1, w2, b2, mxu_dtype=jnp.float32):
    md = mxu_dtype
    inp = jnp.concatenate([x, h], axis=1)
    pre = jnp.dot(inp.astype(md), w1.astype(md),
                  preferred_element_type=jnp.float32) + b1
    a = jnp.tanh(pre)
    logits = jnp.dot(a.astype(md), w2.astype(md),
                     preferred_element_type=jnp.float32) + b2
    return a, jax.nn.softmax(logits, axis=1)


def rnn_seq_ref(xs, h0, w1, b1, w2, b2, mxu_dtype=jnp.float32):
    def step(h, x):
        a, y = rnn_step_ref(x, h, w1, b1, w2, b2, mxu_dtype)
        return a, (a, y)
    _, (a_seq, y_seq) = jax.lax.scan(step, h0, xs)
    return a_seq, y_seq


def init_params(key):
    """Deterministic PyTorch-Linear-style init (uniform +/- 1/sqrt(fan_in))."""
    k1, k2, k3, k4 = jax.random.split(key, 4)
    bound1 = 1.0 / jnp.sqrt(155.0)
    bound2 = 1.0 / jnp.sqrt(128.0)
    w1 = jax.random.uniform(k1, (IN_DIM + HID_DIM, HID_DIM), jnp.float32,
                            -bound1, bound1)
    b1 = jax.random.uniform(k2, (HID_DIM,), jnp.float32, -bound1, bound1)
    w2 = jax.random.uniform(k3, (HID_DIM, OUT_DIM), jnp.float32, -bound2, bound2)
    b2 = jax.random.uniform(k4, (OUT_DIM,), jnp.float32, -bound2, bound2)
    return w1, b1, w2, b2


if __name__ == "__main__":
    key = jax.random.PRNGKey(0)
    kx, kp, ks = jax.random.split(key, 3)

    B = 2
    x = jax.random.normal(kx, (B, IN_DIM), jnp.float32)
    h = jnp.zeros((B, HID_DIM), jnp.float32)   # initHidden() analogue
    w1, b1, w2, b2 = init_params(kp)

    # ---- single step, exact f32 MXU path (matches the module math exactly) ----
    step_f32 = jax.jit(functools.partial(rnn_forward, mxu_dtype=jnp.float32))
    a, y = step_f32(x, h, w1, b1, w2, b2)
    jax.block_until_ready((a, y))

    a_exp, y_exp = rnn_step_ref(x, h, w1, b1, w2, b2)
    assert a.shape == (B, HID_DIM) and y.shape == (B, OUT_DIM)
    assert jnp.allclose(a, a_exp, atol=1e-5), "hidden mismatch (f32)"
    assert jnp.allclose(y, y_exp, atol=1e-5), "softmax mismatch (f32)"
    assert jnp.allclose(jnp.sum(y, axis=1), 1.0, atol=1e-4), "softmax rows != 1"

    # ---- single step, default bf16 MXU operands / bf16 writeback ----
    step_bf16 = jax.jit(rnn_forward)
    a16, y16 = step_bf16(x, h, w1, b1, w2, b2)
    jax.block_until_ready((a16, y16))
    a_exp16, y_exp16 = rnn_step_ref(x, h, w1, b1, w2, b2, mxu_dtype=jnp.bfloat16)
    assert jnp.allclose(a16.astype(jnp.float32), a_exp16, atol=1e-2)
    assert jnp.allclose(y16.astype(jnp.float32), y_exp16, atol=1e-2)
    assert jnp.allclose(jnp.sum(y16.astype(jnp.float32), axis=1), 1.0, atol=2e-2)

    # ---- fused time loop: T steps in one pallas_call, h carried in VMEM ----
    T = 8
    xs = jax.random.normal(ks, (T, B, IN_DIM), jnp.float32)

    seq_f32 = jax.jit(functools.partial(rnn_forward_seq, mxu_dtype=jnp.float32))
    a_seq, y_seq = seq_f32(xs, h, w1, b1, w2, b2)
    jax.block_until_ready((a_seq, y_seq))
    a_seq_exp, y_seq_exp = rnn_seq_ref(xs, h, w1, b1, w2, b2)
    assert a_seq.shape == (T, B, HID_DIM) and y_seq.shape == (T, B, OUT_DIM)
    assert jnp.allclose(a_seq, a_seq_exp, atol=1e-4), "seq hidden mismatch (f32)"
    assert jnp.allclose(y_seq, y_seq_exp, atol=1e-4), "seq softmax mismatch (f32)"

    seq_bf16 = jax.jit(rnn_forward_seq)
    a_seq16, y_seq16 = seq_bf16(xs, h, w1, b1, w2, b2)
    jax.block_until_ready((a_seq16, y_seq16))
    a_seq_exp16, y_seq_exp16 = rnn_seq_ref(xs, h, w1, b1, w2, b2,
                                           mxu_dtype=jnp.bfloat16)
    assert jnp.allclose(a_seq16.astype(jnp.float32), a_seq_exp16, atol=3e-2)
    assert jnp.allclose(y_seq16.astype(jnp.float32), y_seq_exp16, atol=3e-2)
    assert jnp.allclose(jnp.sum(y_seq16.astype(jnp.float32), axis=2), 1.0,
                        atol=2e-2)

    print("KERNEL_OK")
</pallas_src>

<mosaic_0001>
module attributes {stable_mosaic.version = 11 : i64} {
  func.func @_rnn_step_kernel(%arg0: i32, %arg1: memref<16x32xf32, #tpu.memory_space<vmem>>, %arg2: memref<16x128xf32, #tpu.memory_space<vmem>>, %arg3: memref<32x128xf32, #tpu.memory_space<vmem>>, %arg4: memref<128x128xf32, #tpu.memory_space<vmem>>, %arg5: memref<1x128xf32, #tpu.memory_space<vmem>>, %arg6: memref<128x128xf32, #tpu.memory_space<vmem>>, %arg7: memref<1x128xf32, #tpu.memory_space<vmem>>, %arg8: memref<16x128xf32, #tpu.memory_space<vmem>>, %arg9: memref<16x128xf32, #tpu.memory_space<vmem>>) attributes {dimension_semantics = [#tpu.dimension_semantics<parallel>], iteration_bounds = array<i64: 1>, scalar_prefetch = 0 : i64, scratch_operands = 0 : i64, tpu.core_type = #tpu.core_type<tc>, window_params = [{transform_indices = @transform_0, window_bounds = array<i64: 16, 32>}, {transform_indices = @transform_1, window_bounds = array<i64: 16, 128>}, {pipeline_mode = #tpu.pipeline_mode<synchronous>, transform_indices = @transform_2, window_bounds = array<i64: 32, 128>}, {pipeline_mode = #tpu.pipeline_mode<synchronous>, transform_indices = @transform_3, window_bounds = array<i64: 128, 128>}, {pipeline_mode = #tpu.pipeline_mode<synchronous>, transform_indices = @transform_4, window_bounds = array<i64: 1, 128>}, {pipeline_mode = #tpu.pipeline_mode<synchronous>, transform_indices = @transform_5, window_bounds = array<i64: 128, 128>}, {pipeline_mode = #tpu.pipeline_mode<synchronous>, transform_indices = @transform_6, window_bounds = array<i64: 1, 128>}, {transform_indices = @transform_7, window_bounds = array<i64: 16, 128>}, {transform_indices = @transform_8, window_bounds = array<i64: 16, 128>}]} {
    %c0 = arith.constant 0 : index
    %c0_0 = arith.constant 0 : index
    %0 = vector.load %arg1[%c0, %c0_0] : memref<16x32xf32, #tpu.memory_space<vmem>>, vector<16x32xf32>
    %c0_1 = arith.constant 0 : index
    %c0_2 = arith.constant 0 : index
    %1 = vector.load %arg3[%c0_1, %c0_2] : memref<32x128xf32, #tpu.memory_space<vmem>>, vector<32x128xf32>
    %cst = arith.constant dense<0.000000e+00> : vector<16x128xf32>
    %2 = tpu.matmul %0, %1, %cst {dimension_numbers = #tpu.dot_dimension_numbers<[1], [0], [0], [1], [0, 0, 1, 1], [], []>} : vector<16x32xf32>, vector<32x128xf32>, vector<16x128xf32> -> vector<16x128xf32>
    %c0_3 = arith.constant 0 : index
    %c0_4 = arith.constant 0 : index
    %3 = vector.load %arg2[%c0_3, %c0_4] : memref<16x128xf32, #tpu.memory_space<vmem>>, vector<16x128xf32>
    %c0_5 = arith.constant 0 : index
    %c0_6 = arith.constant 0 : index
    %4 = vector.load %arg4[%c0_5, %c0_6] : memref<128x128xf32, #tpu.memory_space<vmem>>, vector<128x128xf32>
    %cst_7 = arith.constant dense<0.000000e+00> : vector<16x128xf32>
    %5 = tpu.matmul %3, %4, %cst_7 {dimension_numbers = #tpu.dot_dimension_numbers<[1], [0], [0], [1], [0, 0, 1, 1], [], []>} : vector<16x128xf32>, vector<128x128xf32>, vector<16x128xf32> -> vector<16x128xf32>
    %6 = arith.addf %2, %5 : vector<16x128xf32>
    %c0_8 = arith.constant 0 : index
    %c0_9 = arith.constant 0 : index
    %7 = vector.load %arg5[%c0_8, %c0_9] : memref<1x128xf32, #tpu.memory_space<vmem>>, vector<1x128xf32>
    %8 = vector.broadcast %7 : vector<1x128xf32> to vector<16x128xf32>
    %9 = arith.addf %6, %8 : vector<16x128xf32>
    %10 = math.tanh %9 : vector<16x128xf32>
    %c0_10 = arith.constant 0 : index
    %c0_11 = arith.constant 0 : index
    %11 = vector.load %arg8[%c0_10, %c0_11] : memref<16x128xf32, #tpu.memory_space<vmem>>, vector<16x128xf32>
    tpu.vector_store %arg8[%c0_10, %c0_11], %10 {strides = array<i32>} : memref<16x128xf32, #tpu.memory_space<vmem>>, vector<16x128xf32>,
    %c0_12 = arith.constant 0 : index
    %c0_13 = arith.constant 0 : index
    %12 = vector.load %arg6[%c0_12, %c0_13] : memref<128x128xf32, #tpu.memory_space<vmem>>, vector<128x128xf32>
    %cst_14 = arith.constant dense<0.000000e+00> : vector<16x128xf32>
    %13 = tpu.matmul %10, %12, %cst_14 {dimension_numbers = #tpu.dot_dimension_numbers<[1], [0], [0], [1], [0, 0, 1, 1], [], []>} : vector<16x128xf32>, vector<128x128xf32>, vector<16x128xf32> -> vector<16x128xf32>
    %c0_15 = arith.constant 0 : index
    %c0_16 = arith.constant 0 : index
    %14 = vector.load %arg7[%c0_15, %c0_16] : memref<1x128xf32, #tpu.memory_space<vmem>>, vector<1x128xf32>
    %15 = vector.broadcast %14 : vector<1x128xf32> to vector<16x128xf32>
    %16 = arith.addf %13, %15 : vector<16x128xf32>
    %cst_17 = arith.constant dense<0xFF800000> : vector<16xf32>
    %17 = vector.multi_reduction <maximumf>, %16, %cst_17 [1] : vector<16x128xf32> to vector<16xf32>
    %18 = vector.shape_cast %17 : vector<16xf32> to vector<16x1xf32>
    %19 = vector.broadcast %18 : vector<16x1xf32> to vector<16x128xf32>
    %20 = arith.subf %16, %19 : vector<16x128xf32>
    %21 = math.exp %20 : vector<16x128xf32>
    %cst_18 = arith.constant dense<0.000000e+00> : vector<16xf32>
    %22 = vector.multi_reduction <add>, %21, %cst_18 [1] : vector<16x128xf32> to vector<16xf32>
    %23 = vector.shape_cast %22 : vector<16xf32> to vector<16x1xf32>
    %24 = vector.broadcast %23 : vector<16x1xf32> to vector<16x128xf32>
    %25 = arith.divf %21, %24 : vector<16x128xf32>
    %c0_19 = arith.constant 0 : index
    %c0_20 = arith.constant 0 : index
    %26 = vector.load %arg9[%c0_19, %c0_20] : memref<16x128xf32, #tpu.memory_space<vmem>>, vector<16x128xf32>
    tpu.vector_store %arg9[%c0_19, %c0_20], %25 {strides = array<i32>} : memref<16x128xf32, #tpu.memory_space<vmem>>, vector<16x128xf32>,
    return
  }
  func.func @transform_0(%arg0: i32) -> (i32, i32) {
    %c0_i32 = arith.constant 0 : i32
    %c0_i32_0 = arith.constant 0 : i32
    return %arg0, %c0_i32 : i32, i32
  }
  func.func @transform_1(%arg0: i32) -> (i32, i32) {
    %c0_i32 = arith.constant 0 : i32
    %c0_i32_0 = arith.constant 0 : i32
    return %arg0, %c0_i32 : i32, i32
  }
  func.func @transform_2(%arg0: i32) -> (i32, i32) {
    %c0_i32 = arith.constant 0 : i32
    %c0_i32_0 = arith.constant 0 : i32
    %c0_i32_1 = arith.constant 0 : i32
    return %c0_i32, %c0_i32_0 : i32, i32
  }
  func.func @transform_3(%arg0: i32) -> (i32, i32) {
    %c0_i32 = arith.constant 0 : i32
    %c0_i32_0 = arith.constant 0 : i32
    %c0_i32_1 = arith.constant 0 : i32
    return %c0_i32, %c0_i32_0 : i32, i32
  }
  func.func @transform_4(%arg0: i32) -> (i32, i32) {
    %c0_i32 = arith.constant 0 : i32
    %c0_i32_0 = arith.constant 0 : i32
    %c0_i32_1 = arith.constant 0 : i32
    return %c0_i32, %c0_i32_0 : i32, i32
  }
  func.func @transform_5(%arg0: i32) -> (i32, i32) {
    %c0_i32 = arith.constant 0 : i32
    %c0_i32_0 = arith.constant 0 : i32
    %c0_i32_1 = arith.constant 0 : i32
    return %c0_i32, %c0_i32_0 : i32, i32
  }
  func.func @transform_6(%arg0: i32) -> (i32, i32) {
    %c0_i32 = arith.constant 0 : i32
    %c0_i32_0 = arith.constant 0 : i32
    %c0_i32_1 = arith.constant 0 : i32
    return %c0_i32, %c0_i32_0 : i32, i32
  }
  func.func @transform_7(%arg0: i32) -> (i32, i32) {
    %c0_i32 = arith.constant 0 : i32
    %c0_i32_0 = arith.constant 0 : i32
    return %arg0, %c0_i32 : i32, i32
  }
  func.func @transform_8(%arg0: i32) -> (i32, i32) {
    %c0_i32 = arith.constant 0 : i32
    %c0_i32_0 = arith.constant 0 : i32
    return %arg0, %c0_i32 : i32, i32
  }
}

</mosaic_0001>

<llo_original>
// kernel: rnn_forward.1
$region0: #{rnn_forward.1}
  #allocation0 [shape = 'u32[]', space=smem, size = 0x4, offset = 0x4, fixed_abs, tag = 'smem constant byte address 0x4 - core index']
  #allocation1 [shape = 'u32[144,128]{1,0:T(1,128)}', space=vmem, size = 0x12000, scoped, tag = 'internal scratch']
  %s0 = inlined_call_operand.vmem [shape: f32[16,32], index: 0, kind: input, shape index: {}]
  %s1 = inlined_call_operand.vmem [shape: f32[16,128], index: 1, kind: input, shape index: {}]
  %s2 = inlined_call_operand.vmem [shape: f32[32,128], index: 2, kind: input, shape index: {}]
  %s3 = inlined_call_operand.vmem [shape: f32[128,128], index: 3, kind: input, shape index: {}]
  %s4 = inlined_call_operand.vmem [shape: f32[1,128], index: 4, kind: input, shape index: {}]
  %s5 = inlined_call_operand.vmem [shape: f32[128,128], index: 5, kind: input, shape index: {}]
  %s6 = inlined_call_operand.vmem [shape: f32[1,128], index: 6, kind: input, shape index: {}]
  %s7 = inlined_call_operand.vmem [shape: f32[16,128], index: 7, kind: output, shape index: {0}]
  %s8 = inlined_call_operand.vmem [shape: f32[16,128], index: 8, kind: output, shape index: {1}]
  %9 = xla_tuple %s7, %s8
  %s10 = sld [smem:[#allocation0]]
  $region46: #{rnn_forward.1} parent=0
    _
  %s12 = ssub.s32 1, %s10
  %s13 = scalar_select 0, %s12, %s10
  // Predicated region
  $region2: #{rnn_forward.1} parent=0 // pred_check
    _
  $region3: #{rnn_forward.1} parent=0 // pred_check_branch
    %15 = sbr.rel (0) target = $region5
  $region4: #{rnn_forward.1} parent=0 // pred_region
    _
  $region5: #{rnn_forward.1} parent=0 // pred_fallthru
    _
  // Predicated region
  $region6: #{rnn_forward.1} parent=0 // pred_check
    _
  $region7: #{rnn_forward.1} parent=0 // pred_check_branch
    %17 = sbr.rel (0) target = $region9
  $region8: #{rnn_forward.1} parent=0 // pred_region
    _
  $region9: #{rnn_forward.1} parent=0 // pred_fallthru
    _
  // Predicated region
  $region10: #{rnn_forward.1} parent=0 // pred_check
    _
  $region11: #{rnn_forward.1} parent=0 // pred_check_branch
    %19 = sbr.rel (0) target = $region13
  $region12: #{rnn_forward.1} parent=0 // pred_region
    _
  $region13: #{rnn_forward.1} parent=0 // pred_fallthru
    _
  // Predicated region
  $region14: #{rnn_forward.1} parent=0 // pred_check
    _
  $region15: #{rnn_forward.1} parent=0 // pred_check_branch
    %21 = sbr.rel (0) target = $region17
  $region16: #{rnn_forward.1} parent=0 // pred_region
    _
  $region17: #{rnn_forward.1} parent=0 // pred_fallthru
    _
  // Predicated region
  $region18: #{rnn_forward.1} parent=0 // pred_check
    _
  $region19: #{rnn_forward.1} parent=0 // pred_check_branch
    %23 = sbr.rel (0) target = $region21
  $region20: #{rnn_forward.1} parent=0 // pred_region
    _
  $region21: #{rnn_forward.1} parent=0 // pred_fallthru
    _
  // Predicated region
  $region22: #{rnn_forward.1} parent=0 // pred_check
    _
  $region23: #{rnn_forward.1} parent=0 // pred_check_branch
    %25 = sbr.rel (0) target = $region25
  $region24: #{rnn_forward.1} parent=0 // pred_region
    _
  $region25: #{rnn_forward.1} parent=0 // pred_fallthru
    _
  // Predicated region
  $region26: #{rnn_forward.1} parent=0 // pred_check
    _
  $region27: #{rnn_forward.1} parent=0 // pred_check_branch
    %27 = sbr.rel (0) target = $region29
  $region28: #{rnn_forward.1} parent=0 // pred_region
    _
  $region29: #{rnn_forward.1} parent=0 // pred_fallthru
    _
  %v28 = vld [vmem:[%s0] sm:$0xff]
  %v29 = vld [vmem:[%s0 + $0x8] sm:$0xff]
  %v30 = vld [vmem:[%s2] sm:$0xff]
  %v31 = vld [vmem:[%s2 + $0x8] sm:$0xff]
  %v32 = vld [vmem:[%s2 + $0x10] sm:$0xff]
  %v33 = vld [vmem:[%s2 + $0x18] sm:$0xff]
  %v34 = vld [vmem:[%s1] sm:$0xff]
  %v35 = vld [vmem:[%s1 + $0x8] sm:$0xff]
  %v36 = vld [vmem:[%s3] sm:$0xff]
  %v37 = vld [vmem:[%s3 + $0x8] sm:$0xff]
  %v38 = vld [vmem:[%s3 + $0x10] sm:$0xff]
  %v39 = vld [vmem:[%s3 + $0x18] sm:$0xff]
  %v40 = vld [vmem:[%s3 + $0x20] sm:$0xff]
  %v41 = vld [vmem:[%s3 + $0x28] sm:$0xff]
  %v42 = vld [vmem:[%s3 + $0x30] sm:$0xff]
  %v43 = vld [vmem:[%s3 + $0x38] sm:$0xff]
  %v44 = vld [vmem:[%s3 + $0x40] sm:$0xff]
  %v45 = vld [vmem:[%s3 + $0x48] sm:$0xff]
  %v46 = vld [vmem:[%s3 + $0x50] sm:$0xff]
  %v47 = vld [vmem:[%s3 + $0x58] sm:$0xff]
  %v48 = vld [vmem:[%s3 + $0x60] sm:$0xff]
  %v49 = vld [vmem:[%s3 + $0x68] sm:$0xff]
  %v50 = vld [vmem:[%s3 + $0x70] sm:$0xff]
  %v51 = vld [vmem:[%s3 + $0x78] sm:$0xff]
  %52 = vmatprep.subr.mxu0 0.0
  %53 = vmatpush1.msra.mxu0 %v36
  %54 = vmatprep.subr.mxu0 0.0
  %55 = vmatpush1.msra.mxu0 %v37
  %56 = vmatprep.subr.mxu0 0.0
  %57 = vmatpush1.msra.mxu0 %v38
  %58 = vmatprep.subr.mxu0 0.0
  %59 = vmatpush1.msra.mxu0 %v39
  %60 = vmatprep.subr.mxu0 0.0
  %61 = vmatpush1.msra.mxu0 %v40
  %62 = vmatprep.subr.mxu0 0.0
  %63 = vmatpush1.msra.mxu0 %v41
  %64 = vmatprep.subr.mxu0 0.0
  %65 = vmatpush1.msra.mxu0 %v42
  %66 = vmatprep.subr.mxu0 0.0
  %67 = vmatpush1.msra.mxu0 %v43
  %68 = vmatprep.subr.mxu0 0.0
  %69 = vmatpush1.msra.mxu0 %v44
  %70 = vmatprep.subr.mxu0 0.0
  %71 = vmatpush1.msra.mxu0 %v45
  %72 = vmatprep.subr.mxu0 0.0
  %73 = vmatpush1.msra.mxu0 %v46
  %74 = vmatprep.subr.mxu0 0.0
  %75 = vmatpush1.msra.mxu0 %v47
  %76 = vmatprep.subr.mxu0 0.0
  %77 = vmatpush1.msra.mxu0 %v48
  %78 = vmatprep.subr.mxu0 0.0
  %79 = vmatpush1.msra.mxu0 %v49
  %80 = vmatprep.subr.mxu0 0.0
  %81 = vmatpush1.msra.mxu0 %v50
  %82 = vmatprep.subr.mxu0 0.0
  %83 = vmatpush1.msra.mxu0 %v51
  %84 = vmatprep.subr.mxu0 0.0
  %85 = vmatpush1.msra.mxu0 0.0
  %86 = vmatprep.subr.mxu0 0.0
  %87 = vmatpush1.msra.mxu0 0.0
  %88 = vmatprep.subr.mxu0 0.0
  %89 = vmatpush1.msra.mxu0 0.0
  %90 = vmatprep.subr.mxu0 0.0
  %91 = vmatpush1.msra.mxu0 0.0
  %92 = vmatprep.subr.mxu0 0.0
  %93 = vmatpush1.msra.mxu0 0.0
  %94 = vmatprep.subr.mxu0 0.0
  %95 = vmatpush1.msra.mxu0 0.0
  %96 = vmatprep.subr.mxu0 0.0
  %97 = vmatpush1.msra.mxu0 0.0
  %98 = vmatprep.subr.mxu0 0.0
  %99 = vmatpush1.msra.mxu0 0.0
  %100 = vmatprep.subr.mxu0 0.0
  %101 = vmatpush1.msra.mxu0 0.0
  %102 = vmatprep.subr.mxu0 0.0
  %103 = vmatpush1.msra.mxu0 0.0
  %104 = vmatprep.subr.mxu0 0.0
  %105 = vmatpush1.msra.mxu0 0.0
  %106 = vmatprep.subr.mxu0 0.0
  %107 = vmatpush1.msra.mxu0 0.0
  %108 = vmatprep.subr.mxu0 0.0
  %109 = vmatpush1.msra.mxu0 0.0
  %110 = vmatprep.subr.mxu0 0.0
  %111 = vmatpush1.msra.mxu0 0.0
  %112 = vmatprep.subr.mxu0 0.0
  %113 = vmatpush1.msra.mxu0 0.0
  %114 = vmatprep.subr.mxu0 0.0
  %115 = vmatpush1.msra.mxu0 0.0
  %116 = vmatprep.mubr.f32.mxu0 0.0
  %117 = vmatmul.mubr.f32.gmra.mrb[0].mxu0 %v34
  %v118 = vpop.f32.mrb[0].mxu0
  %v119 = vadd.f32 0.0, %v118
  %v120 = vpop.f32.mrb[0].mxu0
  %121 = vmatprep.mubr.f32.mxu0 0.0
  %122 = vmatmul.mubr.f32.gmra.mrb[0].mxu0 %v35
  %v123 = vpop.f32.mrb[0].mxu0
  %v124 = vadd.f32 0.0, %v123
  %v125 = vpop.f32.mrb[0].mxu0
  %126 = vdwg.mxu0
  %vm127 = vcmask 261120
  %v129 = vsel %vm127, %v28, 0
  %v132 = vsel %vm127, %v29, 0
  %134 = vmatprep.subr.mxu0 0.0
  %135 = vmatpush1.msra.mxu0 %v30
  %136 = vmatprep.subr.mxu0 0.0
  %137 = vmatpush1.msra.mxu0 %v31
  %138 = vmatprep.subr.mxu0 0.0
  %139 = vmatpush1.msra.mxu0 %v32
  %140 = vmatprep.subr.mxu0 0.0
  %141 = vmatpush1.msra.mxu0 %v33
  %142 = vmatprep.subr.mxu0 0.0
  %143 = vmatpush1.msra.mxu0 0.0
  %144 = vmatprep.subr.mxu0 0.0
  %145 = vmatpush1.msra.mxu0 0.0
  %146 = vmatprep.subr.mxu0 0.0
  %147 = vmatpush1.msra.mxu0 0.0
  %148 = vmatprep.subr.mxu0 0.0
  %149 = vmatpush1.msra.mxu0 0.0
  %150 = vmatprep.subr.mxu0 0.0
  %151 = vmatpush1.msra.mxu0 0.0
  %152 = vmatprep.subr.mxu0 0.0
  %153 = vmatpush1.msra.mxu0 0.0
  %154 = vmatprep.subr.mxu0 0.0
  %155 = vmatpush1.msra.mxu0 0.0
  %156 = vmatprep.subr.mxu0 0.0
  %157 = vmatpush1.msra.mxu0 0.0
  %158 = vmatprep.subr.mxu0 0.0
  %159 = vmatpush1.msra.mxu0 0.0
  %160 = vmatprep.subr.mxu0 0.0
  %161 = vmatpush1.msra.mxu0 0.0
  %162 = vmatprep.subr.mxu0 0.0
  %163 = vmatpush1.msra.mxu0 0.0
  %164 = vmatprep.subr.mxu0 0.0
  %165 = vmatpush1.msra.mxu0 0.0
  %166 = vmatprep.subr.mxu0 0.0
  %167 = vmatpush1.msra.mxu0 0.0
  %168 = vmatprep.subr.mxu0 0.0
  %169 = vmatpush1.msra.mxu0 0.0
  %170 = vmatprep.subr.mxu0 0.0
  %171 = vmatpush1.msra.mxu0 0.0
  %172 = vmatprep.subr.mxu0 0.0
  %173 = vmatpush1.msra.mxu0 0.0
  %174 = vmatprep.subr.mxu0 0.0
  %175 = vmatpush1.msra.mxu0 0.0
  %176 = vmatprep.subr.mxu0 0.0
  %177 = vmatpush1.msra.mxu0 0.0
  %178 = vmatprep.subr.mxu0 0.0
  %179 = vmatpush1.msra.mxu0 0.0
  %180 = vmatprep.subr.mxu0 0.0
  %181 = vmatpush1.msra.mxu0 0.0
  %182 = vmatprep.subr.mxu0 0.0
  %183 = vmatpush1.msra.mxu0 0.0
  %184 = vmatprep.subr.mxu0 0.0
  %185 = vmatpush1.msra.mxu0 0.0
  %186 = vmatprep.subr.mxu0 0.0
  %187 = vmatpush1.msra.mxu0 0.0
  %188 = vmatprep.subr.mxu0 0.0
  %189 = vmatpush1.msra.mxu0 0.0
  %190 = vmatprep.subr.mxu0 0.0
  %191 = vmatpush1.msra.mxu0 0.0
  %192 = vmatprep.subr.mxu0 0.0
  %193 = vmatpush1.msra.mxu0 0.0
  %194 = vmatprep.subr.mxu0 0.0
  %195 = vmatpush1.msra.mxu0 0.0
  %196 = vmatprep.subr.mxu0 0.0
  %197 = vmatpush1.msra.mxu0 0.0
  %198 = vmatprep.mubr.f32.mxu0 0.0
  %199 = vmatmul.mubr.f32.gmra.mrb[0].mxu0 %v129
  %v200 = vpop.f32.mrb[0].mxu0
  %v201 = vadd.f32 %v119, %v200
  %v202 = vpop.f32.mrb[0].mxu0
  %203 = vmatprep.mubr.f32.mxu0 0.0
  %204 = vmatmul.mubr.f32.gmra.mrb[0].mxu0 %v132
  %v205 = vpop.f32.mrb[0].mxu0
  %v206 = vadd.f32 %v124, %v205
  %v207 = vpop.f32.mrb[0].mxu0
  %208 = vdwg.mxu0
  %v209 = vld [vmem:[%s4] sm:$0x1]
  %v211 = vlaneseq
  %v212 = vshrl.u32 %v211, 7
  %v213 = vsub.s32 0, %v212
  %v214 = vrot.slane %v209, %v213
  %v216 = vadd.f32 %v201, %v214
  %v217 = vadd.f32 %v206, %v214
  %v218 = vtanh.pop %v216
  %v219 = vtanh.pop %v217
  %220 = vst [vmem:[%s7] sm:$0xff] %v218
  %221 = vst [vmem:[%s7 + $0x8] sm:$0xff] %v219
  %v222 = vld [vmem:[%s5] sm:$0xff]
  %v223 = vld [vmem:[%s5 + $0x8] sm:$0xff]
  %v224 = vld [vmem:[%s5 + $0x10] sm:$0xff]
  %v225 = vld [vmem:[%s5 + $0x18] sm:$0xff]
  %v226 = vld [vmem:[%s5 + $0x20] sm:$0xff]
  %v227 = vld [vmem:[%s5 + $0x28] sm:$0xff]
  %v228 = vld [vmem:[%s5 + $0x30] sm:$0xff]
  %v229 = vld [vmem:[%s5 + $0x38] sm:$0xff]
  %v230 = vld [vmem:[%s5 + $0x40] sm:$0xff]
  %v231 = vld [vmem:[%s5 + $0x48] sm:$0xff]
  %v232 = vld [vmem:[%s5 + $0x50] sm:$0xff]
  %v233 = vld [vmem:[%s5 + $0x58] sm:$0xff]
  %v234 = vld [vmem:[%s5 + $0x60] sm:$0xff]
  %v235 = vld [vmem:[%s5 + $0x68] sm:$0xff]
  %v236 = vld [vmem:[%s5 + $0x70] sm:$0xff]
  %v237 = vld [vmem:[%s5 + $0x78] sm:$0xff]
  %v238 = vld [vmem:[%s6] sm:$0x1]
  %v240 = vlaneseq
  %v241 = vshrl.u32 %v240, 7
  %v242 = vsub.s32 0, %v241
  %v243 = vrot.slane %v238, %v242
  %245 = vmatprep.subr.mxu0 0.0
  %246 = vmatpush1.msra.mxu0 %v222
  %247 = vmatprep.subr.mxu0 0.0
  %248 = vmatpush1.msra.mxu0 %v223
  %249 = vmatprep.subr.mxu0 0.0
  %250 = vmatpush1.msra.mxu0 %v224
  %251 = vmatprep.subr.mxu0 0.0
  %252 = vmatpush1.msra.mxu0 %v225
  %253 = vmatprep.subr.mxu0 0.0
  %254 = vmatpush1.msra.mxu0 %v226
  %255 = vmatprep.subr.mxu0 0.0
  %256 = vmatpush1.msra.mxu0 %v227
  %257 = vmatprep.subr.mxu0 0.0
  %258 = vmatpush1.msra.mxu0 %v228
  %259 = vmatprep.subr.mxu0 0.0
  %260 = vmatpush1.msra.mxu0 %v229
  %261 = vmatprep.subr.mxu0 0.0
  %262 = vmatpush1.msra.mxu0 %v230
  %263 = vmatprep.subr.mxu0 0.0
  %264 = vmatpush1.msra.mxu0 %v231
  %265 = vmatprep.subr.mxu0 0.0
  %266 = vmatpush1.msra.mxu0 %v232
  %267 = vmatprep.subr.mxu0 0.0
  %268 = vmatpush1.msra.mxu0 %v233
  %269 = vmatprep.subr.mxu0 0.0
  %270 = vmatpush1.msra.mxu0 %v234
  %271 = vmatprep.subr.mxu0 0.0
  %272 = vmatpush1.msra.mxu0 %v235
  %273 = vmatprep.subr.mxu0 0.0
  %274 = vmatpush1.msra.mxu0 %v236
  %275 = vmatprep.subr.mxu0 0.0
  %276 = vmatpush1.msra.mxu0 %v237
  %277 = vmatprep.subr.mxu0 0.0
  %278 = vmatpush1.msra.mxu0 0.0
  %279 = vmatprep.subr.mxu0 0.0
  %280 = vmatpush1.msra.mxu0 0.0
  %281 = vmatprep.subr.mxu0 0.0
  %282 = vmatpush1.msra.mxu0 0.0
  %283 = vmatprep.subr.mxu0 0.0
  %284 = vmatpush1.msra.mxu0 0.0
  %285 = vmatprep.subr.mxu0 0.0
  %286 = vmatpush1.msra.mxu0 0.0
  %287 = vmatprep.subr.mxu0 0.0
  %288 = vmatpush1.msra.mxu0 0.0
  %289 = vmatprep.subr.mxu0 0.0
  %290 = vmatpush1.msra.mxu0 0.0
  %291 = vmatprep.subr.mxu0 0.0
  %292 = vmatpush1.msra.mxu0 0.0
  %293 = vmatprep.subr.mxu0 0.0
  %294 = vmatpush1.msra.mxu0 0.0
  %295 = vmatprep.subr.mxu0 0.0
  %296 = vmatpush1.msra.mxu0 0.0
  %297 = vmatprep.subr.mxu0 0.0
  %298 = vmatpush1.msra.mxu0 0.0
  %299 = vmatprep.subr.mxu0 0.0
  %300 = vmatpush1.msra.mxu0 0.0
  %301 = vmatprep.subr.mxu0 0.0
  %302 = vmatpush1.msra.mxu0 0.0
  %303 = vmatprep.subr.mxu0 0.0
  %304 = vmatpush1.msra.mxu0 0.0
  %305 = vmatprep.subr.mxu0 0.0
  %306 = vmatpush1.msra.mxu0 0.0
  %307 = vmatprep.subr.mxu0 0.0
  %308 = vmatpush1.msra.mxu0 0.0
  %309 = vmatprep.mubr.f32.mxu0 0.0
  %310 = vmatmul.mubr.f32.gmra.mrb[0].mxu0 %v218
  %v311 = vpop.f32.mrb[0].mxu0
  %v312 = vadd.f32 %v243, %v311
  %v313 = vpop.f32.mrb[0].mxu0
  %314 = vmatprep.mubr.f32.mxu0 0.0
  %315 = vmatmul.mubr.f32.gmra.mrb[0].mxu0 %v219
  %v316 = vpop.f32.mrb[0].mxu0
  %v317 = vadd.f32 %v243, %v316
  %v318 = vpop.f32.mrb[0].mxu0
  %319 = vdwg.mxu0
  %320 = vmax.xlane.f32.xlu0 %v312
  %v321 = vpop.xlane.xlu0 %320
  %322 = vmax.xlane.f32.xlu0 %v317
  %v323 = vpop.xlane.xlu0 %322
  %v324 = vsub.f32 %v312, %v321
  %v325 = vsub.f32 %v317, %v323
  %v326 = vmul.f32 %v324, 1.442695
  %v327 = vpow.pop %v326
  %v328 = vmul.f32 %v325, 1.442695
  %v329 = vpow.pop %v328
  %330 = vadd.xlane.f32.xlu0 %v327
  %v331 = vpop.xlane.xlu0 %330
  %332 = vadd.xlane.f32.xlu0 %v329
  %v333 = vpop.xlane.xlu0 %332
  %v334 = vrcp.pop %v331
  %v335 = vmul.f32 %v327, %v334
  %v336 = vrcp.pop %v333
  %v337 = vmul.f32 %v329, %v336
  %338 = vst [vmem:[%s8] sm:$0xff] %v335
  %339 = vst [vmem:[%s8 + $0x8] sm:$0xff] %v337
  // Predicated region
  $region30: #{rnn_forward.1} parent=0 // pred_check
    _
  $region31: #{rnn_forward.1} parent=0 // pred_check_branch
    %341 = sbr.rel (0) target = $region33
  $region32: #{rnn_forward.1} parent=0 // pred_region
    _
  $region33: #{rnn_forward.1} parent=0 // pred_fallthru
    _
  // Predicated region
  $region34: #{rnn_forward.1} parent=0 // pred_check
    _
  $region35: #{rnn_forward.1} parent=0 // pred_check_branch
    %343 = sbr.rel (0) target = $region37
  $region36: #{rnn_forward.1} parent=0 // pred_region
    _
  $region37: #{rnn_forward.1} parent=0 // pred_fallthru
    _
  // Predicated region
  $region38: #{rnn_forward.1} parent=0 // pred_check
    _
  $region39: #{rnn_forward.1} parent=0 // pred_check_branch
    %345 = sbr.rel (0) target = $region41
  $region40: #{rnn_forward.1} parent=0 // pred_region
    _
  $region41: #{rnn_forward.1} parent=0 // pred_fallthru
    _
  // Predicated region
  $region42: #{rnn_forward.1} parent=0 // pred_check
    _
  $region43: #{rnn_forward.1} parent=0 // pred_check_branch
    %347 = sbr.rel (0) target = $region45
  $region44: #{rnn_forward.1} parent=0 // pred_region
    _
  $region45: #{rnn_forward.1} parent=0 // pred_fallthru
    _

</llo_original>
